<compile_context>
chip_gen: v5e
topology: v5e:2x2
jax: 0.10.0
libtpu: 0.0.40
codegen_flags: <defaults>
</compile_context>

<pallas_src>
import functools

import jax
import jax.numpy as jnp
from jax.experimental import pallas as pl
from jax.experimental.pallas import tpu as pltpu


# ---------------------------------------------------------------------------
# Kernel
# ---------------------------------------------------------------------------
def _mlp_forward_kernel(offs_ref, x_ref, w1_ref, b1_ref, w2_ref, b2_ref,
                        w3_ref, b3_ref, out_ref, *, apply_mask):
    # x tile is read once (unpadded f32) and cast to bf16 in-register: no wrapper copy.
    x = x_ref[...].astype(w1_ref.dtype)

    # Layer 1: Linear (bf16 in, f32 acc) + bias + ReLU (f32).
    h = jnp.dot(x, w1_ref[...], preferred_element_type=jnp.float32)
    h = jnp.maximum(h + b1_ref[...], 0.0)

    # Layer 2 (activations re-quantized to bf16 for the MXU).
    h = jnp.dot(h.astype(w2_ref.dtype), w2_ref[...],
                preferred_element_type=jnp.float32)
    h = jnp.maximum(h + b2_ref[...], 0.0)

    # Output layer (no activation).
    logits = jnp.dot(h.astype(w3_ref.dtype), w3_ref[...],
                     preferred_element_type=jnp.float32) + b3_ref[...]

    if apply_mask:
        # CIFAR task masking with DYNAMIC offsets from SMEM (no recompile per task).
        off1 = offs_ref[0]
        off2 = offs_ref[1]
        col = jax.lax.broadcasted_iota(jnp.int32, logits.shape, 1)
        keep = (col >= off1) & (col < off2)
        logits = jnp.where(keep, logits, jnp.float32(-100000000000.0))

    out_ref[...] = logits.astype(out_ref.dtype)


# ---------------------------------------------------------------------------
# Helpers
# ---------------------------------------------------------------------------
def _round_up(v, m):
    return ((v + m - 1) // m) * m


def _pad2(a, rows, cols, dtype=None):
    if dtype is not None:
        a = a.astype(dtype)
    return jnp.pad(a, ((0, rows - a.shape[0]), (0, cols - a.shape[1])))


def _vmem_ceiling():
    """Generation-aware usable-VMEM ceiling (leave ~25% headroom for Mosaic scratch)."""
    try:
        cap = int(pltpu.get_tpu_info().vmem_capacity_bytes)
    except Exception:
        cap = 64 << 20  # conservative: assume v7x-sized VMEM if the query is unavailable
    return max(16 << 20, (cap * 3) // 4)  # 48 MiB on v7x, ~96 MiB on v5e/v6e


def _resident_spec(shape, single_buffer):
    """Constant-index (VMEM-resident) operand; single-buffered when supported."""
    nd = len(shape)

    def idx(i, offs_ref, _nd=nd):
        return (0,) * _nd

    if single_buffer:
        return pl.BlockSpec(shape, idx, pipeline_mode=pl.Buffered(buffer_count=1))
    return pl.BlockSpec(shape, idx)


# ---------------------------------------------------------------------------
# One-time param preparation (hoisted out of the forward pass)
# ---------------------------------------------------------------------------
def prepare_params(params, *, n_outputs, nc_per_task, is_cifar):
    """Lane-pad (to 128) and cast the MLP weights to bf16 ONCE, so each forward call does
    not re-read/re-write the weights in HBM.  w1's K (input) dim stays unpadded so x can be
    streamed unpadded straight from HBM."""
    w1, b1, w2, b2, w3, b3 = params
    n_inputs, n_hidden1 = w1.shape
    n_hidden2 = w2.shape[1]
    assert w3.shape[1] == n_outputs

    h1_p = _round_up(n_hidden1, 128)
    h2_p = _round_up(n_hidden2, 128)
    out_p = _round_up(n_outputs, 128)
    cdt = jnp.bfloat16

    weights = (
        _pad2(w1, n_inputs, h1_p, cdt),                                  # K unpadded
        _pad2(jnp.reshape(b1, (1, -1)).astype(jnp.float32), 1, h1_p),
        _pad2(w2, h1_p, h2_p, cdt),
        _pad2(jnp.reshape(b2, (1, -1)).astype(jnp.float32), 1, h2_p),
        _pad2(w3, h2_p, out_p, cdt),
        _pad2(jnp.reshape(b3, (1, -1)).astype(jnp.float32), 1, out_p),
    )
    weights = jax.block_until_ready(weights)
    return {
        "weights": weights,
        "n_inputs": int(n_inputs),
        "n_outputs": int(n_outputs),
        "nc_per_task": int(nc_per_task),
        "is_cifar": bool(is_cifar),
    }


# ---------------------------------------------------------------------------
# Forward
# ---------------------------------------------------------------------------
def _forward_impl(x, prep, offs, *, apply_mask, tile_batch, single_buffer):
    w1p, b1p, w2p, b2p, w3p, b3p = prep["weights"]
    batch, n_inputs = x.shape
    h1_p, h2_p, out_p = w1p.shape[1], w2p.shape[1], w3p.shape[1]

    # --- batch tiling -------------------------------------------------------
    tb = _round_up(max(1, min(tile_batch, batch)), 16)
    if batch >= 32:
        # Prefer >=2 batch tiles: "parallel" axis can shard across TensorCores (v7x
        # megacore) and the x/out tiles get double-buffer pipelined by BlockSpec.
        tb = min(tb, _round_up((batch + 1) // 2, 16))

    # --- VMEM budget: shrink tb to fit rather than silently clamping ---------
    weight_bufs = 1 if single_buffer else 2
    w_bytes = sum(int(w.size) * w.dtype.itemsize for w in (w1p, w2p, w3p))
    b_bytes = sum(int(b.size) * b.dtype.itemsize for b in (b1p, b2p, b3p))

    def est_for(tb_):
        tile_io = 2 * tb_ * (n_inputs * x.dtype.itemsize + out_p * 4)  # dbl-buffered x/out
        interm = tb_ * (h1_p * 6 + h2_p * 6 + out_p * 4)               # f32 + bf16 copies
        return weight_bufs * (w_bytes + b_bytes) + tile_io + interm + (4 << 20)

    ceiling = _vmem_ceiling()
    while est_for(tb) > ceiling and tb > 16:
        tb = max(16, _round_up(tb // 2, 16))
    est = est_for(tb)
    if est > ceiling:
        # TODO(synk): tile the largest weight over an extra "arbitrary" grid axis with an
        # accumulator instead of erroring, if hidden sizes ever overflow resident VMEM.
        raise ValueError(
            f"MLP weights need ~{est >> 20} MiB of VMEM but only ~{ceiling >> 20} MiB is "
            f"usable on this TPU generation; reduce hidden sizes or tile the weights.")
    vmem_limit = int(min(max(est, 16 << 20), ceiling))

    b_pad = _round_up(batch, tb)
    n_tiles = b_pad // tb
    xp = x if b_pad == batch else jnp.pad(x, ((0, b_pad - batch), (0, 0)))

    grid_spec = pltpu.PrefetchScalarGridSpec(
        num_scalar_prefetch=1,  # offs = [offset1, offset2] lands in SMEM
        grid=(n_tiles,),
        in_specs=[
            # x tile: pipelined, unpadded/un-cast feature dim (full-array dim is legal).
            pl.BlockSpec((tb, n_inputs), lambda i, offs_ref: (i, 0)),
            _resident_spec(w1p.shape, single_buffer),
            _resident_spec(b1p.shape, single_buffer),
            _resident_spec(w2p.shape, single_buffer),
            _resident_spec(b2p.shape, single_buffer),
            _resident_spec(w3p.shape, single_buffer),
            _resident_spec(b3p.shape, single_buffer),
        ],
        out_specs=pl.BlockSpec((tb, out_p), lambda i, offs_ref: (i, 0)),
    )

    return pl.pallas_call(
        functools.partial(_mlp_forward_kernel, apply_mask=apply_mask),
        out_shape=jax.ShapeDtypeStruct((b_pad, out_p), jnp.float32),
        grid_spec=grid_spec,
        compiler_params=pltpu.CompilerParams(
            dimension_semantics=("parallel",),
            vmem_limit_bytes=vmem_limit,
        ),
    )(offs, xp, w1p, b1p, w2p, b2p, w3p, b3p)


_SINGLE_BUFFER_WEIGHTS = [True]  # cached capability flag for pl.Buffered(1)


def net_forward(x, prep, t, *, tile_batch=512):
    """Pallas implementation of Net.forward(x, t) (3-layer MLP branch)."""
    batch, n_inputs = x.shape
    assert n_inputs == prep["n_inputs"], "x feature dim does not match prepared params"
    n_outputs = prep["n_outputs"]
    nc = prep["nc_per_task"]
    is_cifar = prep["is_cifar"]

    # Task offsets are runtime scalars (SMEM scalar prefetch): no recompile per task id.
    if is_cifar:
        t_i = jnp.asarray(t, jnp.int32)
        offs = jnp.stack([t_i * nc, (t_i + 1) * nc]).astype(jnp.int32)
    else:
        offs = jnp.array([0, n_outputs], dtype=jnp.int32)

    kwargs = dict(apply_mask=is_cifar, tile_batch=tile_batch)
    if _SINGLE_BUFFER_WEIGHTS[0]:
        try:
            out_padded = _forward_impl(x, prep, offs, single_buffer=True, **kwargs)
        except Exception:
            # This jax build rejected pl.Buffered(1) on resident operands; fall back to
            # default double-buffered weights (costs VMEM only, not correctness).
            _SINGLE_BUFFER_WEIGHTS[0] = False
            out_padded = _forward_impl(x, prep, offs, single_buffer=False, **kwargs)
    else:
        out_padded = _forward_impl(x, prep, offs, single_buffer=False, **kwargs)

    return out_padded[:batch, :n_outputs]


# ---------------------------------------------------------------------------
# Init + pure-JAX reference
# ---------------------------------------------------------------------------
def init_params(key, n_inputs, n_hiddens, n_layers, n_outputs):
    """Deterministic init mirroring MLP([n_inputs] + [nh]*nl + [n_outputs]) (nl=2 => 3 Linears)."""
    sizes = [n_inputs] + [n_hiddens] * n_layers + [n_outputs]
    params = []
    for i in range(len(sizes) - 1):
        key, kw, kb = jax.random.split(key, 3)
        bound = 1.0 / jnp.sqrt(sizes[i])
        w = jax.random.uniform(kw, (sizes[i], sizes[i + 1]),
                               minval=-bound, maxval=bound, dtype=jnp.float32)
        b = jax.random.uniform(kb, (1, sizes[i + 1]),
                               minval=-bound, maxval=bound, dtype=jnp.float32)
        params += [w, b]
    return tuple(params)


def _reference_forward(x, params, off1, off2, n_outputs, *, mask_needed, use_bf16):
    """Pure-JAX reference. use_bf16=True mirrors the kernel's bf16-in/f32-accum dots."""
    w1, b1, w2, b2, w3, b3 = params
    cast = (lambda a: a.astype(jnp.bfloat16)) if use_bf16 else (lambda a: a)
    h = jnp.dot(cast(x), cast(w1), preferred_element_type=jnp.float32) + b1
    h = jnp.maximum(h, 0.0)
    h = jnp.dot(cast(h), cast(w2), preferred_element_type=jnp.float32) + b2
    h = jnp.maximum(h, 0.0)
    logits = jnp.dot(cast(h), cast(w3), preferred_element_type=jnp.float32) + b3
    if mask_needed:
        col = jnp.arange(n_outputs)[None, :]
        logits = jnp.where((col >= off1) & (col < off2), logits, -100000000000.0)
    return logits


# ---------------------------------------------------------------------------
# Test
# ---------------------------------------------------------------------------
if __name__ == "__main__":
    # Small shapes consistent with the module: MLP(n_layers=2, n_hiddens=32).
    batch, n_inputs, n_hiddens, n_layers = 8, 32, 32, 2
    n_outputs, n_tasks = 16, 4

    key = jax.random.PRNGKey(0)
    kx, kp = jax.random.split(key)
    x = jax.random.normal(kx, (batch, n_inputs), dtype=jnp.float32)
    params = init_params(kp, n_inputs, n_hiddens, n_layers, n_outputs)

    # --- Non-CIFAR path (module default: MLP, no output masking). ---
    prep = prepare_params(params, n_outputs=n_outputs,
                          nc_per_task=n_outputs, is_cifar=False)
    out = jax.block_until_ready(net_forward(x, prep, t=1))
    assert out.shape == (batch, n_outputs)
    ref_bf16 = _reference_forward(x, params, 0, n_outputs, n_outputs,
                                  mask_needed=False, use_bf16=True)
    ref_f32 = _reference_forward(x, params, 0, n_outputs, n_outputs,
                                 mask_needed=False, use_bf16=False)
    assert jnp.allclose(out, ref_bf16, atol=2e-3, rtol=2e-3)
    assert jnp.allclose(out, ref_f32, atol=5e-2, rtol=5e-2)

    # --- CIFAR-style path: mask logits outside the task's class window.
    #     Two task ids go through the SAME compiled kernel (offsets via scalar prefetch). ---
    nc_per_task = n_outputs // n_tasks
    prep_c = prepare_params(params, n_outputs=n_outputs,
                            nc_per_task=nc_per_task, is_cifar=True)
    for t in (1, 2):
        out_c = jax.block_until_ready(net_forward(x, prep_c, t))
        ref_c = _reference_forward(x, params, t * nc_per_task, (t + 1) * nc_per_task,
                                   n_outputs, mask_needed=True, use_bf16=True)
        assert out_c.shape == (batch, n_outputs)
        assert jnp.allclose(out_c, ref_c, atol=2e-3, rtol=2e-3)

    print("KERNEL_OK")
</pallas_src>

<mosaic_0001>
module attributes {stable_mosaic.version = 11 : i64} {
  func.func @_mlp_forward_kernel(%arg0: i32, %arg1: memref<2xi32, #tpu.memory_space<smem>>, %arg2: memref<16x32xf32, #tpu.memory_space<vmem>>, %arg3: memref<32x128xbf16, #tpu.memory_space<vmem>>, %arg4: memref<1x128xf32, #tpu.memory_space<vmem>>, %arg5: memref<128x128xbf16, #tpu.memory_space<vmem>>, %arg6: memref<1x128xf32, #tpu.memory_space<vmem>>, %arg7: memref<128x128xbf16, #tpu.memory_space<vmem>>, %arg8: memref<1x128xf32, #tpu.memory_space<vmem>>, %arg9: memref<16x128xf32, #tpu.memory_space<vmem>>) attributes {dimension_semantics = [#tpu.dimension_semantics<parallel>], iteration_bounds = array<i64: 1>, scalar_prefetch = 1 : i64, scratch_operands = 0 : i64, tpu.core_type = #tpu.core_type<tc>, window_params = [{transform_indices = @transform_0, window_bounds = array<i64: 16, 32>}, {pipeline_mode = #tpu.pipeline_mode<synchronous>, transform_indices = @transform_1, window_bounds = array<i64: 32, 128>}, {pipeline_mode = #tpu.pipeline_mode<synchronous>, transform_indices = @transform_2, window_bounds = array<i64: 1, 128>}, {pipeline_mode = #tpu.pipeline_mode<synchronous>, transform_indices = @transform_3, window_bounds = array<i64: 128, 128>}, {pipeline_mode = #tpu.pipeline_mode<synchronous>, transform_indices = @transform_4, window_bounds = array<i64: 1, 128>}, {pipeline_mode = #tpu.pipeline_mode<synchronous>, transform_indices = @transform_5, window_bounds = array<i64: 128, 128>}, {pipeline_mode = #tpu.pipeline_mode<synchronous>, transform_indices = @transform_6, window_bounds = array<i64: 1, 128>}, {transform_indices = @transform_7, window_bounds = array<i64: 16, 128>}]} {
    %c0 = arith.constant 0 : index
    %c0_0 = arith.constant 0 : index
    %0 = vector.load %arg2[%c0, %c0_0] : memref<16x32xf32, #tpu.memory_space<vmem>>, vector<16x32xf32>
    %1 = arith.truncf %0 : vector<16x32xf32> to vector<16x32xbf16>
    %c0_1 = arith.constant 0 : index
    %c0_2 = arith.constant 0 : index
    %2 = vector.load %arg3[%c0_1, %c0_2] : memref<32x128xbf16, #tpu.memory_space<vmem>>, vector<32x128xbf16>
    %cst = arith.constant dense<0.000000e+00> : vector<16x128xf32>
    %3 = tpu.matmul %1, %2, %cst {dimension_numbers = #tpu.dot_dimension_numbers<[1], [0], [0], [1], [0, 0, 1, 1], [], []>} : vector<16x32xbf16>, vector<32x128xbf16>, vector<16x128xf32> -> vector<16x128xf32>
    %c0_3 = arith.constant 0 : index
    %c0_4 = arith.constant 0 : index
    %4 = vector.load %arg4[%c0_3, %c0_4] : memref<1x128xf32, #tpu.memory_space<vmem>>, vector<1x128xf32>
    %5 = vector.broadcast %4 : vector<1x128xf32> to vector<16x128xf32>
    %6 = arith.addf %3, %5 : vector<16x128xf32>
    %cst_5 = arith.constant 0.000000e+00 : f32
    %7 = vector.broadcast %cst_5 : f32 to vector<16x128xf32>
    %8 = arith.maximumf %6, %7 : vector<16x128xf32>
    %9 = arith.truncf %8 : vector<16x128xf32> to vector<16x128xbf16>
    %c0_6 = arith.constant 0 : index
    %c0_7 = arith.constant 0 : index
    %10 = vector.load %arg5[%c0_6, %c0_7] : memref<128x128xbf16, #tpu.memory_space<vmem>>, vector<128x128xbf16>
    %cst_8 = arith.constant dense<0.000000e+00> : vector<16x128xf32>
    %11 = tpu.matmul %9, %10, %cst_8 {dimension_numbers = #tpu.dot_dimension_numbers<[1], [0], [0], [1], [0, 0, 1, 1], [], []>} : vector<16x128xbf16>, vector<128x128xbf16>, vector<16x128xf32> -> vector<16x128xf32>
    %c0_9 = arith.constant 0 : index
    %c0_10 = arith.constant 0 : index
    %12 = vector.load %arg6[%c0_9, %c0_10] : memref<1x128xf32, #tpu.memory_space<vmem>>, vector<1x128xf32>
    %13 = vector.broadcast %12 : vector<1x128xf32> to vector<16x128xf32>
    %14 = arith.addf %11, %13 : vector<16x128xf32>
    %cst_11 = arith.constant 0.000000e+00 : f32
    %15 = vector.broadcast %cst_11 : f32 to vector<16x128xf32>
    %16 = arith.maximumf %14, %15 : vector<16x128xf32>
    %17 = arith.truncf %16 : vector<16x128xf32> to vector<16x128xbf16>
    %c0_12 = arith.constant 0 : index
    %c0_13 = arith.constant 0 : index
    %18 = vector.load %arg7[%c0_12, %c0_13] : memref<128x128xbf16, #tpu.memory_space<vmem>>, vector<128x128xbf16>
    %cst_14 = arith.constant dense<0.000000e+00> : vector<16x128xf32>
    %19 = tpu.matmul %17, %18, %cst_14 {dimension_numbers = #tpu.dot_dimension_numbers<[1], [0], [0], [1], [0, 0, 1, 1], [], []>} : vector<16x128xbf16>, vector<128x128xbf16>, vector<16x128xf32> -> vector<16x128xf32>
    %c0_15 = arith.constant 0 : index
    %c0_16 = arith.constant 0 : index
    %20 = vector.load %arg8[%c0_15, %c0_16] : memref<1x128xf32, #tpu.memory_space<vmem>>, vector<1x128xf32>
    %21 = vector.broadcast %20 : vector<1x128xf32> to vector<16x128xf32>
    %22 = arith.addf %19, %21 : vector<16x128xf32>
    %c0_17 = arith.constant 0 : index
    %c0_18 = arith.constant 0 : index
    %23 = vector.load %arg9[%c0_17, %c0_18] : memref<16x128xf32, #tpu.memory_space<vmem>>, vector<16x128xf32>
    tpu.vector_store %arg9[%c0_17, %c0_18], %22 {strides = array<i32>} : memref<16x128xf32, #tpu.memory_space<vmem>>, vector<16x128xf32>,
    return
  }
  func.func @transform_0(%arg0: i32, %arg1: memref<2xi32, #tpu.memory_space<smem>>) -> (i32, i32) {
    %c0_i32 = arith.constant 0 : i32
    %c0_i32_0 = arith.constant 0 : i32
    return %arg0, %c0_i32 : i32, i32
  }
  func.func @transform_1(%arg0: i32, %arg1: memref<2xi32, #tpu.memory_space<smem>>) -> (i32, i32) {
    %c0_i32 = arith.constant 0 : i32
    %c0_i32_0 = arith.constant 0 : i32
    %c0_i32_1 = arith.constant 0 : i32
    return %c0_i32, %c0_i32_0 : i32, i32
  }
  func.func @transform_2(%arg0: i32, %arg1: memref<2xi32, #tpu.memory_space<smem>>) -> (i32, i32) {
    %c0_i32 = arith.constant 0 : i32
    %c0_i32_0 = arith.constant 0 : i32
    %c0_i32_1 = arith.constant 0 : i32
    return %c0_i32, %c0_i32_0 : i32, i32
  }
  func.func @transform_3(%arg0: i32, %arg1: memref<2xi32, #tpu.memory_space<smem>>) -> (i32, i32) {
    %c0_i32 = arith.constant 0 : i32
    %c0_i32_0 = arith.constant 0 : i32
    %c0_i32_1 = arith.constant 0 : i32
    return %c0_i32, %c0_i32_0 : i32, i32
  }
  func.func @transform_4(%arg0: i32, %arg1: memref<2xi32, #tpu.memory_space<smem>>) -> (i32, i32) {
    %c0_i32 = arith.constant 0 : i32
    %c0_i32_0 = arith.constant 0 : i32
    %c0_i32_1 = arith.constant 0 : i32
    return %c0_i32, %c0_i32_0 : i32, i32
  }
  func.func @transform_5(%arg0: i32, %arg1: memref<2xi32, #tpu.memory_space<smem>>) -> (i32, i32) {
    %c0_i32 = arith.constant 0 : i32
    %c0_i32_0 = arith.constant 0 : i32
    %c0_i32_1 = arith.constant 0 : i32
    return %c0_i32, %c0_i32_0 : i32, i32
  }
  func.func @transform_6(%arg0: i32, %arg1: memref<2xi32, #tpu.memory_space<smem>>) -> (i32, i32) {
    %c0_i32 = arith.constant 0 : i32
    %c0_i32_0 = arith.constant 0 : i32
    %c0_i32_1 = arith.constant 0 : i32
    return %c0_i32, %c0_i32_0 : i32, i32
  }
  func.func @transform_7(%arg0: i32, %arg1: memref<2xi32, #tpu.memory_space<smem>>) -> (i32, i32) {
    %c0_i32 = arith.constant 0 : i32
    %c0_i32_0 = arith.constant 0 : i32
    return %arg0, %c0_i32 : i32, i32
  }
}

module attributes {stable_mosaic.version = 11 : i64} {
  func.func @_mlp_forward_kernel(%arg0: i32, %arg1: memref<2xi32, #tpu.memory_space<smem>>, %arg2: memref<16x32xf32, #tpu.memory_space<vmem>>, %arg3: memref<32x128xbf16, #tpu.memory_space<vmem>>, %arg4: memref<1x128xf32, #tpu.memory_space<vmem>>, %arg5: memref<128x128xbf16, #tpu.memory_space<vmem>>, %arg6: memref<1x128xf32, #tpu.memory_space<vmem>>, %arg7: memref<128x128xbf16, #tpu.memory_space<vmem>>, %arg8: memref<1x128xf32, #tpu.memory_space<vmem>>, %arg9: memref<16x128xf32, #tpu.memory_space<vmem>>) attributes {dimension_semantics = [#tpu.dimension_semantics<parallel>], iteration_bounds = array<i64: 1>, scalar_prefetch = 1 : i64, scratch_operands = 0 : i64, tpu.core_type = #tpu.core_type<tc>, window_params = [{transform_indices = @transform_0, window_bounds = array<i64: 16, 32>}, {pipeline_mode = #tpu.pipeline_mode<synchronous>, transform_indices = @transform_1, window_bounds = array<i64: 32, 128>}, {pipeline_mode = #tpu.pipeline_mode<synchronous>, transform_indices = @transform_2, window_bounds = array<i64: 1, 128>}, {pipeline_mode = #tpu.pipeline_mode<synchronous>, transform_indices = @transform_3, window_bounds = array<i64: 128, 128>}, {pipeline_mode = #tpu.pipeline_mode<synchronous>, transform_indices = @transform_4, window_bounds = array<i64: 1, 128>}, {pipeline_mode = #tpu.pipeline_mode<synchronous>, transform_indices = @transform_5, window_bounds = array<i64: 128, 128>}, {pipeline_mode = #tpu.pipeline_mode<synchronous>, transform_indices = @transform_6, window_bounds = array<i64: 1, 128>}, {transform_indices = @transform_7, window_bounds = array<i64: 16, 128>}]} {
    %c0 = arith.constant 0 : index
    %c0_0 = arith.constant 0 : index
    %0 = vector.load %arg2[%c0, %c0_0] : memref<16x32xf32, #tpu.memory_space<vmem>>, vector<16x32xf32>
    %1 = arith.truncf %0 : vector<16x32xf32> to vector<16x32xbf16>
    %c0_1 = arith.constant 0 : index
    %c0_2 = arith.constant 0 : index
    %2 = vector.load %arg3[%c0_1, %c0_2] : memref<32x128xbf16, #tpu.memory_space<vmem>>, vector<32x128xbf16>
    %cst = arith.constant dense<0.000000e+00> : vector<16x128xf32>
    %3 = tpu.matmul %1, %2, %cst {dimension_numbers = #tpu.dot_dimension_numbers<[1], [0], [0], [1], [0, 0, 1, 1], [], []>} : vector<16x32xbf16>, vector<32x128xbf16>, vector<16x128xf32> -> vector<16x128xf32>
    %c0_3 = arith.constant 0 : index
    %c0_4 = arith.constant 0 : index
    %4 = vector.load %arg4[%c0_3, %c0_4] : memref<1x128xf32, #tpu.memory_space<vmem>>, vector<1x128xf32>
    %5 = vector.broadcast %4 : vector<1x128xf32> to vector<16x128xf32>
    %6 = arith.addf %3, %5 : vector<16x128xf32>
    %cst_5 = arith.constant 0.000000e+00 : f32
    %7 = vector.broadcast %cst_5 : f32 to vector<16x128xf32>
    %8 = arith.maximumf %6, %7 : vector<16x128xf32>
    %9 = arith.truncf %8 : vector<16x128xf32> to vector<16x128xbf16>
    %c0_6 = arith.constant 0 : index
    %c0_7 = arith.constant 0 : index
    %10 = vector.load %arg5[%c0_6, %c0_7] : memref<128x128xbf16, #tpu.memory_space<vmem>>, vector<128x128xbf16>
    %cst_8 = arith.constant dense<0.000000e+00> : vector<16x128xf32>
    %11 = tpu.matmul %9, %10, %cst_8 {dimension_numbers = #tpu.dot_dimension_numbers<[1], [0], [0], [1], [0, 0, 1, 1], [], []>} : vector<16x128xbf16>, vector<128x128xbf16>, vector<16x128xf32> -> vector<16x128xf32>
    %c0_9 = arith.constant 0 : index
    %c0_10 = arith.constant 0 : index
    %12 = vector.load %arg6[%c0_9, %c0_10] : memref<1x128xf32, #tpu.memory_space<vmem>>, vector<1x128xf32>
    %13 = vector.broadcast %12 : vector<1x128xf32> to vector<16x128xf32>
    %14 = arith.addf %11, %13 : vector<16x128xf32>
    %cst_11 = arith.constant 0.000000e+00 : f32
    %15 = vector.broadcast %cst_11 : f32 to vector<16x128xf32>
    %16 = arith.maximumf %14, %15 : vector<16x128xf32>
    %17 = arith.truncf %16 : vector<16x128xf32> to vector<16x128xbf16>
    %c0_12 = arith.constant 0 : index
    %c0_13 = arith.constant 0 : index
    %18 = vector.load %arg7[%c0_12, %c0_13] : memref<128x128xbf16, #tpu.memory_space<vmem>>, vector<128x128xbf16>
    %cst_14 = arith.constant dense<0.000000e+00> : vector<16x128xf32>
    %19 = tpu.matmul %17, %18, %cst_14 {dimension_numbers = #tpu.dot_dimension_numbers<[1], [0], [0], [1], [0, 0, 1, 1], [], []>} : vector<16x128xbf16>, vector<128x128xbf16>, vector<16x128xf32> -> vector<16x128xf32>
    %c0_15 = arith.constant 0 : index
    %c0_16 = arith.constant 0 : index
    %20 = vector.load %arg8[%c0_15, %c0_16] : memref<1x128xf32, #tpu.memory_space<vmem>>, vector<1x128xf32>
    %21 = vector.broadcast %20 : vector<1x128xf32> to vector<16x128xf32>
    %22 = arith.addf %19, %21 : vector<16x128xf32>
    %c0_17 = arith.constant 0 : index
    %c0_18 = arith.constant 0 : index
    %23 = vector.load %arg9[%c0_17, %c0_18] : memref<16x128xf32, #tpu.memory_space<vmem>>, vector<16x128xf32>
    tpu.vector_store %arg9[%c0_17, %c0_18], %22 {strides = array<i32>} : memref<16x128xf32, #tpu.memory_space<vmem>>, vector<16x128xf32>,
    return
  }
  func.func @transform_0(%arg0: i32, %arg1: memref<2xi32, #tpu.memory_space<smem>>) -> (i32, i32) {
    %c0_i32 = arith.constant 0 : i32
    %c0_i32_0 = arith.constant 0 : i32
    return %arg0, %c0_i32 : i32, i32
  }
  func.func @transform_1(%arg0: i32, %arg1: memref<2xi32, #tpu.memory_space<smem>>) -> (i32, i32) {
    %c0_i32 = arith.constant 0 : i32
    %c0_i32_0 = arith.constant 0 : i32
    %c0_i32_1 = arith.constant 0 : i32
    return %c0_i32, %c0_i32_0 : i32, i32
  }
  func.func @transform_2(%arg0: i32, %arg1: memref<2xi32, #tpu.memory_space<smem>>) -> (i32, i32) {
    %c0_i32 = arith.constant 0 : i32
    %c0_i32_0 = arith.constant 0 : i32
    %c0_i32_1 = arith.constant 0 : i32
    return %c0_i32, %c0_i32_0 : i32, i32
  }
  func.func @transform_3(%arg0: i32, %arg1: memref<2xi32, #tpu.memory_space<smem>>) -> (i32, i32) {
    %c0_i32 = arith.constant 0 : i32
    %c0_i32_0 = arith.constant 0 : i32
    %c0_i32_1 = arith.constant 0 : i32
    return %c0_i32, %c0_i32_0 : i32, i32
  }
  func.func @transform_4(%arg0: i32, %arg1: memref<2xi32, #tpu.memory_space<smem>>) -> (i32, i32) {
    %c0_i32 = arith.constant 0 : i32
    %c0_i32_0 = arith.constant 0 : i32
    %c0_i32_1 = arith.constant 0 : i32
    return %c0_i32, %c0_i32_0 : i32, i32
  }
  func.func @transform_5(%arg0: i32, %arg1: memref<2xi32, #tpu.memory_space<smem>>) -> (i32, i32) {
    %c0_i32 = arith.constant 0 : i32
    %c0_i32_0 = arith.constant 0 : i32
    %c0_i32_1 = arith.constant 0 : i32
    return %c0_i32, %c0_i32_0 : i32, i32
  }
  func.func @transform_6(%arg0: i32, %arg1: memref<2xi32, #tpu.memory_space<smem>>) -> (i32, i32) {
    %c0_i32 = arith.constant 0 : i32
    %c0_i32_0 = arith.constant 0 : i32
    %c0_i32_1 = arith.constant 0 : i32
    return %c0_i32, %c0_i32_0 : i32, i32
  }
  func.func @transform_7(%arg0: i32, %arg1: memref<2xi32, #tpu.memory_space<smem>>) -> (i32, i32) {
    %c0_i32 = arith.constant 0 : i32
    %c0_i32_0 = arith.constant 0 : i32
    return %arg0, %c0_i32 : i32, i32
  }
}

</mosaic_0001>

<llo_original>
// kernel: tpu_custom_call.1
$region0: #{tpu_custom_call.1}
  #allocation0 [shape = 'u32[]', space=smem, size = 0x4, offset = 0x4, fixed_abs, tag = 'smem constant byte address 0x4 - core index']
  #allocation1 [shape = 'u32[72,128]{1,0:T(1,128)}', space=vmem, size = 0x9000, scoped, tag = 'internal scratch']
  #allocation2 [shape = 's32[1]{0}', space=sflag, size = 0x4, scoped, tag = 'scoped memory for tpu_custom_call.1']
  #allocation3 [shape = 'u8[512]{0}', space=smem, size = 0x200, scoped, tag = 'prefetched SMEM operand 0']
  %s0 = inlined_call_operand.hbm [shape: s32[2], index: 0, kind: input, shape index: {}]
  %s1 = inlined_call_operand.hbm [shape: f32[16,32], index: 1, kind: input, shape index: {}]
  %s2 = inlined_call_operand.hbm [shape: bf16[32,128], index: 2, kind: input, shape index: {}]
  %s3 = inlined_call_operand.vmem [shape: f32[1,128], index: 3, kind: input, shape index: {}]
  %s4 = inlined_call_operand.hbm [shape: bf16[128,128], index: 4, kind: input, shape index: {}]
  %s5 = inlined_call_operand.vmem [shape: f32[1,128], index: 5, kind: input, shape index: {}]
  %s6 = inlined_call_operand.hbm [shape: bf16[128,128], index: 6, kind: input, shape index: {}]
  %s7 = inlined_call_operand.vmem [shape: f32[1,128], index: 7, kind: input, shape index: {}]
  %s8 = inlined_call_operand.hbm [shape: f32[16,128], index: 8, kind: output, shape index: {}]
  %s9 = sld [smem:[#allocation0]]
  $region54: #{tpu_custom_call.1} parent=0
    _
  %s11 = ssub.s32 1, %s9
  %s12 = scalar_select 0, %s11, %s9
  %s14 = sshll.u32 %s0, 4
  %s15 = int_to_ptr.hbm [resolvable:$true] %s14
  %17 = dma.hbm_to_smem %s15, 16, [#allocation3], [#allocation2]
  %19 = dma.done [#allocation2], 16
  %20 = sfence
  $region1: #{tpu_custom_call.1} parent=0
    #allocation4 [shape = 'u8[8192]{0}', space=vmem, size = 0x2000, scoped, tag = 'input window, operand 1, single buffered']
    #allocation5 [shape = 's32[1]{0}', space=sflag, size = 0x4, scoped, tag = 'scoped memory for tpu_custom_call.1']
    #allocation6 [shape = 's32[1]{0}', space=sflag, size = 0x4, scoped, tag = 'scoped memory for tpu_custom_call.1']
    #allocation7 [shape = 'u8[8192]{0}', space=vmem, size = 0x2000, scoped, tag = 'input window, operand 2, single buffered']
    #allocation8 [shape = 's32[1]{0}', space=sflag, size = 0x4, scoped, tag = 'scoped memory for tpu_custom_call.1']
    #allocation9 [shape = 'u8[32768]{0}', space=vmem, size = 0x8000, scoped, tag = 'input window, operand 4, single buffered']
    #allocation10 [shape = 'u8[32768]{0}', space=vmem, size = 0x8000, scoped, tag = 'input window, operand 6, single buffered']
    #allocation11 [shape = 's32[1]{0}', space=sflag, size = 0x4, scoped, tag = 'scoped memory for tpu_custom_call.1']
    #allocation12 [shape = 'u8[8192]{0}', space=vmem, size = 0x2000, scoped, tag = 'output window, operand 0, single buffered']
    %21 = vsyncpa [#allocation5], 0
    %22 = vsyncpa [#allocation8], 0
    %23 = vsyncpa [#allocation11], 0
    %24 = vsyncpa [#allocation6], 0
    // Predicated region
    $region2: #{tpu_custom_call.1} parent=1 // pred_check
      _
    $region3: #{tpu_custom_call.1} parent=1 // pred_check_branch
      %26 = sbr.rel (0) target = $region5
    $region4: #{tpu_custom_call.1} parent=1 // pred_region
      %28 = vsyncadd [#allocation5], 0
      %s29 = sshll.u32 %s1, 4
      %s30 = int_to_ptr.hbm [resolvable:$true] %s29
      %s31 = sshll.u32 [#allocation4], 4
      %s32 = int_to_ptr.vmem [resolvable:$true] %s31
      %37 = dma.hbm_to_vmem [thread:$0]  %s30, 256, %s32, [#allocation5], 128, 128, 8
    $region5: #{tpu_custom_call.1} parent=1 // pred_fallthru
      _
    // Predicated region
    $region6: #{tpu_custom_call.1} parent=1 // pred_check
      _
    $region7: #{tpu_custom_call.1} parent=1 // pred_check_branch
      %39 = sbr.rel (0) target = $region9
    $region8: #{tpu_custom_call.1} parent=1 // pred_region
      %41 = vsyncadd [#allocation8], 0
      %s42 = sshll.u32 %s2, 4
      %s43 = int_to_ptr.hbm [resolvable:$true] %s42
      %s44 = sshll.u32 [#allocation7], 4
      %s45 = int_to_ptr.vmem [resolvable:$true] %s44
      %50 = dma.hbm_to_vmem [thread:$0]  %s43, 256, %s45, [#allocation8], 64, 64, 4
    $region9: #{tpu_custom_call.1} parent=1 // pred_fallthru
      _
    // Predicated region
    $region10: #{tpu_custom_call.1} parent=1 // pred_check
      _
    $region11: #{tpu_custom_call.1} parent=1 // pred_check_branch
      %52 = sbr.rel (0) target = $region13
    $region12: #{tpu_custom_call.1} parent=1 // pred_region
      _
    $region13: #{tpu_custom_call.1} parent=1 // pred_fallthru
      _
    // Predicated region
    $region14: #{tpu_custom_call.1} parent=1 // pred_check
      _
    $region15: #{tpu_custom_call.1} parent=1 // pred_check_branch
      %54 = sbr.rel (0) target = $region17
    $region16: #{tpu_custom_call.1} parent=1 // pred_region
      %56 = vsyncadd [#allocation8], 0
      %s57 = sshll.u32 %s4, 4
      %s58 = int_to_ptr.hbm [resolvable:$true] %s57
      %s59 = sshll.u32 [#allocation9], 4
      %s60 = int_to_ptr.vmem [resolvable:$true] %s59
      %65 = dma.hbm_to_vmem [thread:$0]  %s58, 1024, %s60, [#allocation8], 64, 64, 4
    $region17: #{tpu_custom_call.1} parent=1 // pred_fallthru
      _
    // Predicated region
    $region18: #{tpu_custom_call.1} parent=1 // pred_check
      _
    $region19: #{tpu_custom_call.1} parent=1 // pred_check_branch
      %67 = sbr.rel (0) target = $region21
    $region20: #{tpu_custom_call.1} parent=1 // pred_region
      _
    $region21: #{tpu_custom_call.1} parent=1 // pred_fallthru
      _
    // Predicated region
    $region22: #{tpu_custom_call.1} parent=1 // pred_check
      _
    $region23: #{tpu_custom_call.1} parent=1 // pred_check_branch
      %69 = sbr.rel (0) target = $region25
    $region24: #{tpu_custom_call.1} parent=1 // pred_region
      %71 = vsyncadd [#allocation11], 0
      %s72 = sshll.u32 %s6, 4
      %s73 = int_to_ptr.hbm [resolvable:$true] %s72
      %s74 = sshll.u32 [#allocation10], 4
      %s75 = int_to_ptr.vmem [resolvable:$true] %s74
      %80 = dma.hbm_to_vmem [thread:$0]  %s73, 1024, %s75, [#allocation11], 64, 64, 4
    $region25: #{tpu_custom_call.1} parent=1 // pred_fallthru
      _
    // Predicated region
    $region26: #{tpu_custom_call.1} parent=1 // pred_check
      _
    $region27: #{tpu_custom_call.1} parent=1 // pred_check_branch
      %82 = sbr.rel (0) target = $region29
    $region28: #{tpu_custom_call.1} parent=1 // pred_region
      _
    $region29: #{tpu_custom_call.1} parent=1 // pred_fallthru
      _
    // Predicated region
    $region30: #{tpu_custom_call.1} parent=1 // pred_check
      _
    $region31: #{tpu_custom_call.1} parent=1 // pred_check_branch
      %84 = sbr.rel (0) target = $region33
    $region32: #{tpu_custom_call.1} parent=1 // pred_region
      %86 = dma.done [#allocation5], 256
    $region33: #{tpu_custom_call.1} parent=1 // pred_fallthru
      _
    // Predicated region
    $region34: #{tpu_custom_call.1} parent=1 // pred_check
      _
    $region35: #{tpu_custom_call.1} parent=1 // pred_check_branch
      %88 = sbr.rel (0) target = $region37
    $region36: #{tpu_custom_call.1} parent=1 // pred_region
      %90 = dma.done [#allocation8], 256
    $region37: #{tpu_custom_call.1} parent=1 // pred_fallthru
      _
    // Predicated region
    $region38: #{tpu_custom_call.1} parent=1 // pred_check
      _
    $region39: #{tpu_custom_call.1} parent=1 // pred_check_branch
      %92 = sbr.rel (0) target = $region41
    $region40: #{tpu_custom_call.1} parent=1 // pred_region
      %94 = dma.done [#allocation8], 1024
    $region41: #{tpu_custom_call.1} parent=1 // pred_fallthru
      _
    // Predicated region
    $region42: #{tpu_custom_call.1} parent=1 // pred_check
      _
    $region43: #{tpu_custom_call.1} parent=1 // pred_check_branch
      %96 = sbr.rel (0) target = $region45
    $region44: #{tpu_custom_call.1} parent=1 // pred_region
      %98 = dma.done [#allocation11], 1024
    $region45: #{tpu_custom_call.1} parent=1 // pred_fallthru
      _
    %v100 = vld [vmem:[#allocation4] sm:$0xff]
    %v101 = vld [vmem:[#allocation4 + $0x8] sm:$0xff]
    %v102 = vpack.c.bf16 %v101, %v100
    %v103 = vld [vmem:[#allocation7] sm:$0xf]
    %v104 = vld [vmem:[#allocation7 + $0x4] sm:$0xf]
    %v105 = vld [vmem:[#allocation7 + $0x8] sm:$0xf]
    %v106 = vld [vmem:[#allocation7 + $0xc] sm:$0xf]
    %v107 = vld [vmem:[%s3] sm:$0x1]
    %v109 = vperm.slane %v107, 0
    %v115 = vunpack.c.l.b16 %v103
    %v116 = vunpack.c.l.b16 %v104
    %v117 = vunpack.c.l.b16 %v105
    %v118 = vunpack.c.l.b16 %v106
    %v119 = vpack.c.b16 %v116, %v115
    %v120 = vpack.c.b16 %v118, %v117
    %vm123 = vcmask 261120
    %v125 = vsel %vm123, %v102, 0
    %127 = vmatpush.bf16.msra.mxu0 0
    %128 = vmatpush.bf16.msra.mxu0 0
    %129 = vmatpush.bf16.msra.mxu0 0
    %130 = vmatpush.bf16.msra.mxu0 0
    %131 = vmatpush.bf16.msra.mxu0 0
    %132 = vmatpush.bf16.msra.mxu0 0
    %133 = vmatpush.bf16.msra.mxu0 %v120
    %134 = vmatpush.bf16.msra.mxu0 %v119
    %135 = vmatmul.bf16.gmra.mxu0 %v125
    %v136 = vpop.f32.mrf.mxu0
    %v137 = vadd.f32 %v109, %v136
    %v138 = vpop.f32.mrf.mxu0
    %v139 = vadd.f32 %v109, %v138
    %140 = vdwg.mxu0
    %v141 = vmax.f32 %v137, 0.0
    %v142 = vmax.f32 %v139, 0.0
    %v143 = vpack.c.bf16 %v142, %v141
    %v144 = vld [vmem:[#allocation9] sm:$0xf]
    %v145 = vld [vmem:[#allocation9 + $0x4] sm:$0xf]
    %v146 = vld [vmem:[#allocation9 + $0x8] sm:$0xf]
    %v147 = vld [vmem:[#allocation9 + $0xc] sm:$0xf]
    %v148 = vld [vmem:[#allocation9 + $0x10] sm:$0xf]
    %v149 = vld [vmem:[#allocation9 + $0x14] sm:$0xf]
    %v150 = vld [vmem:[#allocation9 + $0x18] sm:$0xf]
    %v151 = vld [vmem:[#allocation9 + $0x1c] sm:$0xf]
    %v152 = vld [vmem:[#allocation9 + $0x20] sm:$0xf]
    %v153 = vld [vmem:[#allocation9 + $0x24] sm:$0xf]
    %v154 = vld [vmem:[#allocation9 + $0x28] sm:$0xf]
    %v155 = vld [vmem:[#allocation9 + $0x2c] sm:$0xf]
    %v156 = vld [vmem:[#allocation9 + $0x30] sm:$0xf]
    %v157 = vld [vmem:[#allocation9 + $0x34] sm:$0xf]
    %v158 = vld [vmem:[#allocation9 + $0x38] sm:$0xf]
    %v159 = vld [vmem:[#allocation9 + $0x3c] sm:$0xf]
    %v160 = vld [vmem:[%s5] sm:$0x1]
    %v162 = vperm.slane %v160, 0
    %v180 = vunpack.c.l.b16 %v144
    %v181 = vunpack.c.l.b16 %v145
    %v182 = vunpack.c.l.b16 %v146
    %v183 = vunpack.c.l.b16 %v147
    %v184 = vunpack.c.l.b16 %v148
    %v185 = vunpack.c.l.b16 %v149
    %v186 = vunpack.c.l.b16 %v150
    %v187 = vunpack.c.l.b16 %v151
    %v188 = vunpack.c.l.b16 %v152
    %v189 = vunpack.c.l.b16 %v153
    %v190 = vunpack.c.l.b16 %v154
    %v191 = vunpack.c.l.b16 %v155
    %v192 = vunpack.c.l.b16 %v156
    %v193 = vunpack.c.l.b16 %v157
    %v194 = vunpack.c.l.b16 %v158
    %v195 = vunpack.c.l.b16 %v159
    %v196 = vpack.c.b16 %v181, %v180
    %v197 = vpack.c.b16 %v183, %v182
    %v198 = vpack.c.b16 %v185, %v184
    %v199 = vpack.c.b16 %v187, %v186
    %v200 = vpack.c.b16 %v189, %v188
    %v201 = vpack.c.b16 %v191, %v190
    %v202 = vpack.c.b16 %v193, %v192
    %v203 = vpack.c.b16 %v195, %v194
    %212 = vmatpush.bf16.msra.mxu0 %v203
    %213 = vmatpush.bf16.msra.mxu0 %v202
    %214 = vmatpush.bf16.msra.mxu0 %v201
    %215 = vmatpush.bf16.msra.mxu0 %v200
    %216 = vmatpush.bf16.msra.mxu0 %v199
    %217 = vmatpush.bf16.msra.mxu0 %v198
    %218 = vmatpush.bf16.msra.mxu0 %v197
    %219 = vmatpush.bf16.msra.mxu0 %v196
    %220 = vmatmul.bf16.gmra.mxu0 %v143
    %v221 = vpop.f32.mrf.mxu0
    %v222 = vadd.f32 %v162, %v221
    %v223 = vpop.f32.mrf.mxu0
    %v224 = vadd.f32 %v162, %v223
    %225 = vdwg.mxu0
    %v226 = vmax.f32 %v222, 0.0
    %v227 = vmax.f32 %v224, 0.0
    %v228 = vpack.c.bf16 %v227, %v226
    %v229 = vld [vmem:[#allocation10] sm:$0xf]
    %v230 = vld [vmem:[#allocation10 + $0x4] sm:$0xf]
    %v231 = vld [vmem:[#allocation10 + $0x8] sm:$0xf]
    %v232 = vld [vmem:[#allocation10 + $0xc] sm:$0xf]
    %v233 = vld [vmem:[#allocation10 + $0x10] sm:$0xf]
    %v234 = vld [vmem:[#allocation10 + $0x14] sm:$0xf]
    %v235 = vld [vmem:[#allocation10 + $0x18] sm:$0xf]
    %v236 = vld [vmem:[#allocation10 + $0x1c] sm:$0xf]
    %v237 = vld [vmem:[#allocation10 + $0x20] sm:$0xf]
    %v238 = vld [vmem:[#allocation10 + $0x24] sm:$0xf]
    %v239 = vld [vmem:[#allocation10 + $0x28] sm:$0xf]
    %v240 = vld [vmem:[#allocation10 + $0x2c] sm:$0xf]
    %v241 = vld [vmem:[#allocation10 + $0x30] sm:$0xf]
    %v242 = vld [vmem:[#allocation10 + $0x34] sm:$0xf]
    %v243 = vld [vmem:[#allocation10 + $0x38] sm:$0xf]
    %v244 = vld [vmem:[#allocation10 + $0x3c] sm:$0xf]
    %v245 = vld [vmem:[%s7] sm:$0x1]
    %v247 = vperm.slane %v245, 0
    %v265 = vunpack.c.l.b16 %v229
    %v266 = vunpack.c.l.b16 %v230
    %v267 = vunpack.c.l.b16 %v231
    %v268 = vunpack.c.l.b16 %v232
    %v269 = vunpack.c.l.b16 %v233
    %v270 = vunpack.c.l.b16 %v234
    %v271 = vunpack.c.l.b16 %v235
    %v272 = vunpack.c.l.b16 %v236
    %v273 = vunpack.c.l.b16 %v237
    %v274 = vunpack.c.l.b16 %v238
    %v275 = vunpack.c.l.b16 %v239
    %v276 = vunpack.c.l.b16 %v240
    %v277 = vunpack.c.l.b16 %v241
    %v278 = vunpack.c.l.b16 %v242
    %v279 = vunpack.c.l.b16 %v243
    %v280 = vunpack.c.l.b16 %v244
    %v281 = vpack.c.b16 %v266, %v265
    %v282 = vpack.c.b16 %v268, %v267
    %v283 = vpack.c.b16 %v270, %v269
    %v284 = vpack.c.b16 %v272, %v271
    %v285 = vpack.c.b16 %v274, %v273
    %v286 = vpack.c.b16 %v276, %v275
    %v287 = vpack.c.b16 %v278, %v277
    %v288 = vpack.c.b16 %v280, %v279
    %297 = vmatpush.bf16.msra.mxu0 %v288
    %298 = vmatpush.bf16.msra.mxu0 %v287
    %299 = vmatpush.bf16.msra.mxu0 %v286
    %300 = vmatpush.bf16.msra.mxu0 %v285
    %301 = vmatpush.bf16.msra.mxu0 %v284
    %302 = vmatpush.bf16.msra.mxu0 %v283
    %303 = vmatpush.bf16.msra.mxu0 %v282
    %304 = vmatpush.bf16.msra.mxu0 %v281
    %305 = vmatmul.bf16.gmra.mxu0 %v228
    %v306 = vpop.f32.mrf.mxu0
    %v307 = vadd.f32 %v247, %v306
    %v308 = vpop.f32.mrf.mxu0
    %v309 = vadd.f32 %v247, %v308
    %310 = vdwg.mxu0
    %311 = vst [vmem:[#allocation12] sm:$0xff] %v307
    %312 = vst [vmem:[#allocation12 + $0x8] sm:$0xff] %v309
    // Predicated region
    $region46: #{tpu_custom_call.1} parent=1 // pred_check
      _
    $region47: #{tpu_custom_call.1} parent=1 // pred_check_branch
      %314 = sbr.rel (0) target = $region49
    $region48: #{tpu_custom_call.1} parent=1 // pred_region
      %316 = vsyncadd [#allocation6], 0
      %s317 = sshll.u32 [#allocation12], 4
      %s318 = int_to_ptr.vmem [resolvable:$true] %s317
      %s319 = sshll.u32 %s8, 4
      %s320 = int_to_ptr.hbm [resolvable:$true] %s319
      %325 = dma.vmem_to_hbm [thread:$0]  %s318, 256, %s320, [#allocation6], 128, 128, 8
    $region49: #{tpu_custom_call.1} parent=1 // pred_fallthru
      _
    // Predicated region
    $region50: #{tpu_custom_call.1} parent=1 // pred_check
      _
    $region51: #{tpu_custom_call.1} parent=1 // pred_check_branch
      %327 = sbr.rel (0) target = $region53
    $region52: #{tpu_custom_call.1} parent=1 // pred_region
      %329 = dma.done [#allocation6], 256
    $region53: #{tpu_custom_call.1} parent=1 // pred_fallthru
      _
    %330 = vsyncpa [#allocation5], 1
    %331 = vsyncpa [#allocation8], 1
    %332 = vsyncpa [#allocation11], 1
    %333 = vsyncpa [#allocation6], 1

// kernel: tpu_custom_call.1
$region0: #{tpu_custom_call.1}
  #allocation0 [shape = 'u32[]', space=smem, size = 0x4, offset = 0x4, fixed_abs, tag = 'smem constant byte address 0x4 - core index']
  #allocation1 [shape = 'u32[72,128]{1,0:T(1,128)}', space=vmem, size = 0x9000, scoped, tag = 'internal scratch']
  #allocation2 [shape = 's32[1]{0}', space=sflag, size = 0x4, scoped, tag = 'scoped memory for tpu_custom_call.1']
  #allocation3 [shape = 'u8[512]{0}', space=smem, size = 0x200, scoped, tag = 'prefetched SMEM operand 0']
  %s0 = inlined_call_operand.hbm [shape: s32[2], index: 0, kind: input, shape index: {}]
  %s1 = inlined_call_operand.hbm [shape: f32[16,32], index: 1, kind: input, shape index: {}]
  %s2 = inlined_call_operand.hbm [shape: bf16[32,128], index: 2, kind: input, shape index: {}]
  %s3 = inlined_call_operand.vmem [shape: f32[1,128], index: 3, kind: input, shape index: {}]
  %s4 = inlined_call_operand.hbm [shape: bf16[128,128], index: 4, kind: input, shape index: {}]
  %s5 = inlined_call_operand.vmem [shape: f32[1,128], index: 5, kind: input, shape index: {}]
  %s6 = inlined_call_operand.hbm [shape: bf16[128,128], index: 6, kind: input, shape index: {}]
  %s7 = inlined_call_operand.vmem [shape: f32[1,128], index: 7, kind: input, shape index: {}]
  %s8 = inlined_call_operand.hbm [shape: f32[16,128], index: 8, kind: output, shape index: {}]
  %s9 = sld [smem:[#allocation0]]
  $region54: #{tpu_custom_call.1} parent=0
    _
  %s11 = ssub.s32 1, %s9
  %s12 = scalar_select 0, %s11, %s9
  %s14 = sshll.u32 %s0, 4
  %s15 = int_to_ptr.hbm [resolvable:$true] %s14
  %17 = dma.hbm_to_smem %s15, 16, [#allocation3], [#allocation2]
  %19 = dma.done [#allocation2], 16
  %20 = sfence
  $region1: #{tpu_custom_call.1} parent=0
    #allocation4 [shape = 'u8[8192]{0}', space=vmem, size = 0x2000, scoped, tag = 'input window, operand 1, single buffered']
    #allocation5 [shape = 's32[1]{0}', space=sflag, size = 0x4, scoped, tag = 'scoped memory for tpu_custom_call.1']
    #allocation6 [shape = 's32[1]{0}', space=sflag, size = 0x4, scoped, tag = 'scoped memory for tpu_custom_call.1']
    #allocation7 [shape = 'u8[8192]{0}', space=vmem, size = 0x2000, scoped, tag = 'input window, operand 2, single buffered']
    #allocation8 [shape = 's32[1]{0}', space=sflag, size = 0x4, scoped, tag = 'scoped memory for tpu_custom_call.1']
    #allocation9 [shape = 'u8[32768]{0}', space=vmem, size = 0x8000, scoped, tag = 'input window, operand 4, single buffered']
    #allocation10 [shape = 'u8[32768]{0}', space=vmem, size = 0x8000, scoped, tag = 'input window, operand 6, single buffered']
    #allocation11 [shape = 's32[1]{0}', space=sflag, size = 0x4, scoped, tag = 'scoped memory for tpu_custom_call.1']
    #allocation12 [shape = 'u8[8192]{0}', space=vmem, size = 0x2000, scoped, tag = 'output window, operand 0, single buffered']
    %21 = vsyncpa [#allocation5], 0
    %22 = vsyncpa [#allocation8], 0
    %23 = vsyncpa [#allocation11], 0
    %24 = vsyncpa [#allocation6], 0
    // Predicated region
    $region2: #{tpu_custom_call.1} parent=1 // pred_check
      _
    $region3: #{tpu_custom_call.1} parent=1 // pred_check_branch
      %26 = sbr.rel (0) target = $region5
    $region4: #{tpu_custom_call.1} parent=1 // pred_region
      %28 = vsyncadd [#allocation5], 0
      %s29 = sshll.u32 %s1, 4
      %s30 = int_to_ptr.hbm [resolvable:$true] %s29
      %s31 = sshll.u32 [#allocation4], 4
      %s32 = int_to_ptr.vmem [resolvable:$true] %s31
      %37 = dma.hbm_to_vmem [thread:$0]  %s30, 256, %s32, [#allocation5], 128, 128, 8
    $region5: #{tpu_custom_call.1} parent=1 // pred_fallthru
      _
    // Predicated region
    $region6: #{tpu_custom_call.1} parent=1 // pred_check
      _
    $region7: #{tpu_custom_call.1} parent=1 // pred_check_branch
      %39 = sbr.rel (0) target = $region9
    $region8: #{tpu_custom_call.1} parent=1 // pred_region
      %41 = vsyncadd [#allocation8], 0
      %s42 = sshll.u32 %s2, 4
      %s43 = int_to_ptr.hbm [resolvable:$true] %s42
      %s44 = sshll.u32 [#allocation7], 4
      %s45 = int_to_ptr.vmem [resolvable:$true] %s44
      %50 = dma.hbm_to_vmem [thread:$0]  %s43, 256, %s45, [#allocation8], 64, 64, 4
    $region9: #{tpu_custom_call.1} parent=1 // pred_fallthru
      _
    // Predicated region
    $region10: #{tpu_custom_call.1} parent=1 // pred_check
      _
    $region11: #{tpu_custom_call.1} parent=1 // pred_check_branch
      %52 = sbr.rel (0) target = $region13
    $region12: #{tpu_custom_call.1} parent=1 // pred_region
      _
    $region13: #{tpu_custom_call.1} parent=1 // pred_fallthru
      _
    // Predicated region
    $region14: #{tpu_custom_call.1} parent=1 // pred_check
      _
    $region15: #{tpu_custom_call.1} parent=1 // pred_check_branch
      %54 = sbr.rel (0) target = $region17
    $region16: #{tpu_custom_call.1} parent=1 // pred_region
      %56 = vsyncadd [#allocation8], 0
      %s57 = sshll.u32 %s4, 4
      %s58 = int_to_ptr.hbm [resolvable:$true] %s57
      %s59 = sshll.u32 [#allocation9], 4
      %s60 = int_to_ptr.vmem [resolvable:$true] %s59
      %65 = dma.hbm_to_vmem [thread:$0]  %s58, 1024, %s60, [#allocation8], 64, 64, 4
    $region17: #{tpu_custom_call.1} parent=1 // pred_fallthru
      _
    // Predicated region
    $region18: #{tpu_custom_call.1} parent=1 // pred_check
      _
    $region19: #{tpu_custom_call.1} parent=1 // pred_check_branch
      %67 = sbr.rel (0) target = $region21
    $region20: #{tpu_custom_call.1} parent=1 // pred_region
      _
    $region21: #{tpu_custom_call.1} parent=1 // pred_fallthru
      _
    // Predicated region
    $region22: #{tpu_custom_call.1} parent=1 // pred_check
      _
    $region23: #{tpu_custom_call.1} parent=1 // pred_check_branch
      %69 = sbr.rel (0) target = $region25
    $region24: #{tpu_custom_call.1} parent=1 // pred_region
      %71 = vsyncadd [#allocation11], 0
      %s72 = sshll.u32 %s6, 4
      %s73 = int_to_ptr.hbm [resolvable:$true] %s72
      %s74 = sshll.u32 [#allocation10], 4
      %s75 = int_to_ptr.vmem [resolvable:$true] %s74
      %80 = dma.hbm_to_vmem [thread:$0]  %s73, 1024, %s75, [#allocation11], 64, 64, 4
    $region25: #{tpu_custom_call.1} parent=1 // pred_fallthru
      _
    // Predicated region
    $region26: #{tpu_custom_call.1} parent=1 // pred_check
      _
    $region27: #{tpu_custom_call.1} parent=1 // pred_check_branch
      %82 = sbr.rel (0) target = $region29
    $region28: #{tpu_custom_call.1} parent=1 // pred_region
      _
    $region29: #{tpu_custom_call.1} parent=1 // pred_fallthru
      _
    // Predicated region
    $region30: #{tpu_custom_call.1} parent=1 // pred_check
      _
    $region31: #{tpu_custom_call.1} parent=1 // pred_check_branch
      %84 = sbr.rel (0) target = $region33
    $region32: #{tpu_custom_call.1} parent=1 // pred_region
      %86 = dma.done [#allocation5], 256
    $region33: #{tpu_custom_call.1} parent=1 // pred_fallthru
      _
    // Predicated region
    $region34: #{tpu_custom_call.1} parent=1 // pred_check
      _
    $region35: #{tpu_custom_call.1} parent=1 // pred_check_branch
      %88 = sbr.rel (0) target = $region37
    $region36: #{tpu_custom_call.1} parent=1 // pred_region
      %90 = dma.done [#allocation8], 256
    $region37: #{tpu_custom_call.1} parent=1 // pred_fallthru
      _
    // Predicated region
    $region38: #{tpu_custom_call.1} parent=1 // pred_check
      _
    $region39: #{tpu_custom_call.1} parent=1 // pred_check_branch
      %92 = sbr.rel (0) target = $region41
    $region40: #{tpu_custom_call.1} parent=1 // pred_region
      %94 = dma.done [#allocation8], 1024
    $region41: #{tpu_custom_call.1} parent=1 // pred_fallthru
      _
    // Predicated region
    $region42: #{tpu_custom_call.1} parent=1 // pred_check
      _
    $region43: #{tpu_custom_call.1} parent=1 // pred_check_branch
      %96 = sbr.rel (0) target = $region45
    $region44: #{tpu_custom_call.1} parent=1 // pred_region
      %98 = dma.done [#allocation11], 1024
    $region45: #{tpu_custom_call.1} parent=1 // pred_fallthru
      _
    %v100 = vld [vmem:[#allocation4] sm:$0xff]
    %v101 = vld [vmem:[#allocation4 + $0x8] sm:$0xff]
    %v102 = vpack.c.bf16 %v101, %v100
    %v103 = vld [vmem:[#allocation7] sm:$0xf]
    %v104 = vld [vmem:[#allocation7 + $0x4] sm:$0xf]
    %v105 = vld [vmem:[#allocation7 + $0x8] sm:$0xf]
    %v106 = vld [vmem:[#allocation7 + $0xc] sm:$0xf]
    %v107 = vld [vmem:[%s3] sm:$0x1]
    %v109 = vperm.slane %v107, 0
    %v115 = vunpack.c.l.b16 %v103
    %v116 = vunpack.c.l.b16 %v104
    %v117 = vunpack.c.l.b16 %v105
    %v118 = vunpack.c.l.b16 %v106
    %v119 = vpack.c.b16 %v116, %v115
    %v120 = vpack.c.b16 %v118, %v117
    %vm123 = vcmask 261120
    %v125 = vsel %vm123, %v102, 0
    %127 = vmatpush.bf16.msra.mxu0 0
    %128 = vmatpush.bf16.msra.mxu0 0
    %129 = vmatpush.bf16.msra.mxu0 0
    %130 = vmatpush.bf16.msra.mxu0 0
    %131 = vmatpush.bf16.msra.mxu0 0
    %132 = vmatpush.bf16.msra.mxu0 0
    %133 = vmatpush.bf16.msra.mxu0 %v120
    %134 = vmatpush.bf16.msra.mxu0 %v119
    %135 = vmatmul.bf16.gmra.mxu0 %v125
    %v136 = vpop.f32.mrf.mxu0
    %v137 = vadd.f32 %v109, %v136
    %v138 = vpop.f32.mrf.mxu0
    %v139 = vadd.f32 %v109, %v138
    %140 = vdwg.mxu0
    %v141 = vmax.f32 %v137, 0.0
    %v142 = vmax.f32 %v139, 0.0
    %v143 = vpack.c.bf16 %v142, %v141
    %v144 = vld [vmem:[#allocation9] sm:$0xf]
    %v145 = vld [vmem:[#allocation9 + $0x4] sm:$0xf]
    %v146 = vld [vmem:[#allocation9 + $0x8] sm:$0xf]
    %v147 = vld [vmem:[#allocation9 + $0xc] sm:$0xf]
    %v148 = vld [vmem:[#allocation9 + $0x10] sm:$0xf]
    %v149 = vld [vmem:[#allocation9 + $0x14] sm:$0xf]
    %v150 = vld [vmem:[#allocation9 + $0x18] sm:$0xf]
    %v151 = vld [vmem:[#allocation9 + $0x1c] sm:$0xf]
    %v152 = vld [vmem:[#allocation9 + $0x20] sm:$0xf]
    %v153 = vld [vmem:[#allocation9 + $0x24] sm:$0xf]
    %v154 = vld [vmem:[#allocation9 + $0x28] sm:$0xf]
    %v155 = vld [vmem:[#allocation9 + $0x2c] sm:$0xf]
    %v156 = vld [vmem:[#allocation9 + $0x30] sm:$0xf]
    %v157 = vld [vmem:[#allocation9 + $0x34] sm:$0xf]
    %v158 = vld [vmem:[#allocation9 + $0x38] sm:$0xf]
    %v159 = vld [vmem:[#allocation9 + $0x3c] sm:$0xf]
    %v160 = vld [vmem:[%s5] sm:$0x1]
    %v162 = vperm.slane %v160, 0
    %v180 = vunpack.c.l.b16 %v144
    %v181 = vunpack.c.l.b16 %v145
    %v182 = vunpack.c.l.b16 %v146
    %v183 = vunpack.c.l.b16 %v147
    %v184 = vunpack.c.l.b16 %v148
    %v185 = vunpack.c.l.b16 %v149
    %v186 = vunpack.c.l.b16 %v150
    %v187 = vunpack.c.l.b16 %v151
    %v188 = vunpack.c.l.b16 %v152
    %v189 = vunpack.c.l.b16 %v153
    %v190 = vunpack.c.l.b16 %v154
    %v191 = vunpack.c.l.b16 %v155
    %v192 = vunpack.c.l.b16 %v156
    %v193 = vunpack.c.l.b16 %v157
    %v194 = vunpack.c.l.b16 %v158
    %v195 = vunpack.c.l.b16 %v159
    %v196 = vpack.c.b16 %v181, %v180
    %v197 = vpack.c.b16 %v183, %v182
    %v198 = vpack.c.b16 %v185, %v184
    %v199 = vpack.c.b16 %v187, %v186
    %v200 = vpack.c.b16 %v189, %v188
    %v201 = vpack.c.b16 %v191, %v190
    %v202 = vpack.c.b16 %v193, %v192
    %v203 = vpack.c.b16 %v195, %v194
    %212 = vmatpush.bf16.msra.mxu0 %v203
    %213 = vmatpush.bf16.msra.mxu0 %v202
    %214 = vmatpush.bf16.msra.mxu0 %v201
    %215 = vmatpush.bf16.msra.mxu0 %v200
    %216 = vmatpush.bf16.msra.mxu0 %v199
    %217 = vmatpush.bf16.msra.mxu0 %v198
    %218 = vmatpush.bf16.msra.mxu0 %v197
    %219 = vmatpush.bf16.msra.mxu0 %v196
    %220 = vmatmul.bf16.gmra.mxu0 %v143
    %v221 = vpop.f32.mrf.mxu0
    %v222 = vadd.f32 %v162, %v221
    %v223 = vpop.f32.mrf.mxu0
    %v224 = vadd.f32 %v162, %v223
    %225 = vdwg.mxu0
    %v226 = vmax.f32 %v222, 0.0
    %v227 = vmax.f32 %v224, 0.0
    %v228 = vpack.c.bf16 %v227, %v226
    %v229 = vld [vmem:[#allocation10] sm:$0xf]
    %v230 = vld [vmem:[#allocation10 + $0x4] sm:$0xf]
    %v231 = vld [vmem:[#allocation10 + $0x8] sm:$0xf]
    %v232 = vld [vmem:[#allocation10 + $0xc] sm:$0xf]
    %v233 = vld [vmem:[#allocation10 + $0x10] sm:$0xf]
    %v234 = vld [vmem:[#allocation10 + $0x14] sm:$0xf]
    %v235 = vld [vmem:[#allocation10 + $0x18] sm:$0xf]
    %v236 = vld [vmem:[#allocation10 + $0x1c] sm:$0xf]
    %v237 = vld [vmem:[#allocation10 + $0x20] sm:$0xf]
    %v238 = vld [vmem:[#allocation10 + $0x24] sm:$0xf]
    %v239 = vld [vmem:[#allocation10 + $0x28] sm:$0xf]
    %v240 = vld [vmem:[#allocation10 + $0x2c] sm:$0xf]
    %v241 = vld [vmem:[#allocation10 + $0x30] sm:$0xf]
    %v242 = vld [vmem:[#allocation10 + $0x34] sm:$0xf]
    %v243 = vld [vmem:[#allocation10 + $0x38] sm:$0xf]
    %v244 = vld [vmem:[#allocation10 + $0x3c] sm:$0xf]
    %v245 = vld [vmem:[%s7] sm:$0x1]
    %v247 = vperm.slane %v245, 0
    %v265 = vunpack.c.l.b16 %v229
    %v266 = vunpack.c.l.b16 %v230
    %v267 = vunpack.c.l.b16 %v231
    %v268 = vunpack.c.l.b16 %v232
    %v269 = vunpack.c.l.b16 %v233
    %v270 = vunpack.c.l.b16 %v234
    %v271 = vunpack.c.l.b16 %v235
    %v272 = vunpack.c.l.b16 %v236
    %v273 = vunpack.c.l.b16 %v237
    %v274 = vunpack.c.l.b16 %v238
    %v275 = vunpack.c.l.b16 %v239
    %v276 = vunpack.c.l.b16 %v240
    %v277 = vunpack.c.l.b16 %v241
    %v278 = vunpack.c.l.b16 %v242
    %v279 = vunpack.c.l.b16 %v243
    %v280 = vunpack.c.l.b16 %v244
    %v281 = vpack.c.b16 %v266, %v265
    %v282 = vpack.c.b16 %v268, %v267
    %v283 = vpack.c.b16 %v270, %v269
    %v284 = vpack.c.b16 %v272, %v271
    %v285 = vpack.c.b16 %v274, %v273
    %v286 = vpack.c.b16 %v276, %v275
    %v287 = vpack.c.b16 %v278, %v277
    %v288 = vpack.c.b16 %v280, %v279
    %297 = vmatpush.bf16.msra.mxu0 %v288
    %298 = vmatpush.bf16.msra.mxu0 %v287
    %299 = vmatpush.bf16.msra.mxu0 %v286
    %300 = vmatpush.bf16.msra.mxu0 %v285
    %301 = vmatpush.bf16.msra.mxu0 %v284
    %302 = vmatpush.bf16.msra.mxu0 %v283
    %303 = vmatpush.bf16.msra.mxu0 %v282
    %304 = vmatpush.bf16.msra.mxu0 %v281
    %305 = vmatmul.bf16.gmra.mxu0 %v228
    %v306 = vpop.f32.mrf.mxu0
    %v307 = vadd.f32 %v247, %v306
    %v308 = vpop.f32.mrf.mxu0
    %v309 = vadd.f32 %v247, %v308
    %310 = vdwg.mxu0
    %311 = vst [vmem:[#allocation12] sm:$0xff] %v307
    %312 = vst [vmem:[#allocation12 + $0x8] sm:$0xff] %v309
    // Predicated region
    $region46: #{tpu_custom_call.1} parent=1 // pred_check
      _
    $region47: #{tpu_custom_call.1} parent=1 // pred_check_branch
      %314 = sbr.rel (0) target = $region49
    $region48: #{tpu_custom_call.1} parent=1 // pred_region
      %316 = vsyncadd [#allocation6], 0
      %s317 = sshll.u32 [#allocation12], 4
      %s318 = int_to_ptr.vmem [resolvable:$true] %s317
      %s319 = sshll.u32 %s8, 4
      %s320 = int_to_ptr.hbm [resolvable:$true] %s319
      %325 = dma.vmem_to_hbm [thread:$0]  %s318, 256, %s320, [#allocation6], 128, 128, 8
    $region49: #{tpu_custom_call.1} parent=1 // pred_fallthru
      _
    // Predicated region
    $region50: #{tpu_custom_call.1} parent=1 // pred_check
      _
    $region51: #{tpu_custom_call.1} parent=1 // pred_check_branch
      %327 = sbr.rel (0) target = $region53
    $region52: #{tpu_custom_call.1} parent=1 // pred_region
      %329 = dma.done [#allocation6], 256
    $region53: #{tpu_custom_call.1} parent=1 // pred_fallthru
      _
    %330 = vsyncpa [#allocation5], 1
    %331 = vsyncpa [#allocation8], 1
    %332 = vsyncpa [#allocation11], 1
    %333 = vsyncpa [#allocation6], 1

</llo_original>
